<compile_context>
chip_gen: v7x
topology: tpu7x:2x2x1
jax: 0.10.0
libtpu: 0.0.40
codegen_flags: <defaults>
</compile_context>

<pallas_src>
import functools

import jax
import jax.numpy as jnp
from jax.experimental import pallas as pl
from jax.experimental.pallas import tpu as pltpu


def _round_up(x: int, m: int) -> int:
    return ((x + m - 1) // m) * m


def matmul_bias_kernel(x_ref, w_ref, b_ref, o_ref, acc_ref):
    """One (tm, tn) output tile, reduction over the F axis (grid axis 2)."""
    k = pl.program_id(2)

    @pl.when(k == 0)
    def _init():
        acc_ref[...] = jnp.zeros_like(acc_ref)

    # MXU accumulate in f32 regardless of operand dtype.
    acc_ref[...] += jnp.dot(
        x_ref[...], w_ref[...], preferred_element_type=jnp.float32
    )

    @pl.when(k == pl.num_programs(2) - 1)
    def _epilogue():
        # Bias add only once, in the final reduction step.
        o_ref[...] = (acc_ref[...] + b_ref[...]).astype(o_ref.dtype)


@functools.partial(jax.jit, static_argnames=("operand_dtype",))
def normalized_model_forward(x_nchw, mean_c, std_c, w, b,
                             operand_dtype=jnp.float32):
    """x_nchw: (N, C, H, W); mean_c/std_c: (C,); w: (C*H*W, K); b: (K,)."""
    n, c, h, wd = x_nchw.shape
    f = c * h * wd
    k_out = w.shape[1]

    # --- Fold the channel normalization into the linear head (one-time, off
    # --- the hot path): (x - m)/s @ W + b == x @ (W/s) + (b - (m/s) @ W).
    inv_std_row = jnp.repeat(1.0 / std_c.astype(jnp.float32), h * wd)      # (F,)
    mean_row = jnp.repeat(mean_c.astype(jnp.float32), h * wd)              # (F,)
    w_f32 = w.astype(jnp.float32)
    w_fold = w_f32 * inv_std_row[:, None]                                  # (F, K)
    b_fold = b.astype(jnp.float32) - (mean_row * inv_std_row) @ w_f32      # (K,)

    x2d = x_nchw.reshape(n, f).astype(jnp.float32)

    # --- Tile sizes (modest so double-buffered tiles fit comfortably even in
    # --- v7x's smaller VMEM) and zero-padding to tile multiples.
    tm = 256 if n >= 256 else _round_up(n, 8)          # sublane-filled M tile
    tk = 512 if f >= 512 else _round_up(f, 128)        # reduction tile
    tn = 512 if k_out >= 512 else _round_up(k_out, 128)  # lane-dense out tile

    m_pad = _round_up(n, tm)
    f_pad = _round_up(f, tk)
    k_pad = _round_up(k_out, tn)

    x_p = jnp.pad(x2d, ((0, m_pad - n), (0, f_pad - f)))
    w_p = jnp.pad(w_fold, ((0, f_pad - f), (0, k_pad - k_out)))
    b_p = jnp.pad(b_fold, (0, k_pad - k_out)).reshape(1, k_pad)

    # Optional bf16 MXU operands (f32 accumulation stays in the kernel).
    x_p = x_p.astype(operand_dtype)
    w_p = w_p.astype(operand_dtype)

    grid = (m_pad // tm, k_pad // tn, f_pad // tk)

    itemsize = jnp.dtype(operand_dtype).itemsize
    cost = pl.CostEstimate(
        flops=2 * m_pad * f_pad * k_pad,
        transcendentals=0,
        bytes_accessed=(m_pad * f_pad * itemsize
                        + f_pad * k_pad * itemsize
                        + k_pad * 4
                        + m_pad * k_pad * 4),
    )

    out = pl.pallas_call(
        matmul_bias_kernel,
        out_shape=jax.ShapeDtypeStruct((m_pad, k_pad), jnp.float32),
        grid_spec=pltpu.PrefetchScalarGridSpec(
            num_scalar_prefetch=0,
            grid=grid,
            in_specs=[
                pl.BlockSpec((tm, tk), lambda i, j, kk: (i, kk)),   # x tile
                pl.BlockSpec((tk, tn), lambda i, j, kk: (kk, j)),   # W tile
                pl.BlockSpec((1, tn), lambda i, j, kk: (0, j)),     # bias row
            ],
            out_specs=pl.BlockSpec((tm, tn), lambda i, j, kk: (i, j)),
            scratch_shapes=[pltpu.VMEM((tm, tn), jnp.float32)],
        ),
        compiler_params=pltpu.CompilerParams(
            dimension_semantics=("parallel", "parallel", "arbitrary"),
        ),
        cost_estimate=cost,
    )(x_p, w_p, b_p)

    # Slice off M / K padding.
    return out[:n, :k_out]


def reference_forward(x_nchw, mean_c, std_c, w, b):
    # Pure-JAX reference mirroring the PyTorch module:
    #   model(Normalize(mean, std)(x)) with model = flatten -> linear.
    mean = mean_c.reshape(1, -1, 1, 1)
    std = std_c.reshape(1, -1, 1, 1)
    x_norm = (x_nchw - mean) / std
    n = x_nchw.shape[0]
    return x_norm.reshape(n, -1) @ w + b.reshape(1, -1)


if __name__ == "__main__":
    # TODO(synk): the wrapped `model` is an arbitrary nn.Module passed to
    # NormalizedModel.__init__; it is stood in for by a deterministic linear
    # head here (weights initialized in-script, not loaded from a checkpoint).
    N, C, H, W = 2, 4, 16, 16
    K = 32
    F = C * H * W

    key = jax.random.PRNGKey(0)
    kx, kw, kb = jax.random.split(key, 3)

    x = jax.random.normal(kx, (N, C, H, W), dtype=jnp.float32)
    w = (jax.random.normal(kw, (F, K), dtype=jnp.float32) / jnp.sqrt(F)).astype(
        jnp.float32
    )
    b = jax.random.normal(kb, (K,), dtype=jnp.float32) * 0.01

    # Deterministic per-channel normalization statistics (ImageNet-style).
    mean_c = jnp.array([0.485, 0.456, 0.406, 0.5], dtype=jnp.float32)
    std_c = jnp.array([0.229, 0.224, 0.225, 0.25], dtype=jnp.float32)

    ref = reference_forward(x, mean_c, std_c, w, b)

    # f32 operand path (exact within f32 roundoff of the reference).
    out_f32 = normalized_model_forward(x, mean_c, std_c, w, b,
                                       operand_dtype=jnp.float32)
    out_f32 = jax.block_until_ready(out_f32)
    assert out_f32.shape == (N, K)
    assert jnp.allclose(out_f32, ref, atol=1e-4, rtol=1e-4), (
        f"f32 max abs err {jnp.max(jnp.abs(out_f32 - ref))}"
    )

    # bf16 MXU-operand path (v6e/v7x optimization); f32 accumulation in-kernel,
    # so only operand quantization error — checked at a relaxed tolerance.
    out_bf16 = normalized_model_forward(x, mean_c, std_c, w, b,
                                        operand_dtype=jnp.bfloat16)
    out_bf16 = jax.block_until_ready(out_bf16)
    assert out_bf16.shape == (N, K)
    assert jnp.allclose(out_bf16, ref, atol=2.5e-1, rtol=1e-1), (
        f"bf16 max abs err {jnp.max(jnp.abs(out_bf16 - ref))}"
    )

    print("KERNEL_OK")
</pallas_src>

<mosaic_0001>
module attributes {stable_mosaic.version = 11 : i64} {
  func.func @matmul_bias_kernel(%arg0: i32, %arg1: i32, %arg2: i32, %arg3: memref<8x512xf32, #tpu.memory_space<vmem>>, %arg4: memref<512x128xf32, #tpu.memory_space<vmem>>, %arg5: memref<1x128xf32, #tpu.memory_space<vmem>>, %arg6: memref<8x128xf32, #tpu.memory_space<vmem>>, %arg7: memref<8x128xf32, #tpu.memory_space<vmem>>) attributes {dimension_semantics = [#tpu.dimension_semantics<parallel>, #tpu.dimension_semantics<parallel>, #tpu.dimension_semantics<arbitrary>], iteration_bounds = array<i64: 1, 1, 2>, scalar_prefetch = 0 : i64, scratch_operands = 1 : i64, tpu.core_type = #tpu.core_type<tc>, window_params = [{transform_indices = @transform_0, window_bounds = array<i64: 8, 512>}, {transform_indices = @transform_1, window_bounds = array<i64: 512, 128>}, {transform_indices = @transform_2, window_bounds = array<i64: 1, 128>}, {transform_indices = @transform_3, window_bounds = array<i64: 8, 128>}]} {
    %c0_i32 = arith.constant 0 : i32
    %0 = arith.cmpi eq, %arg2, %c0_i32 : i32
    %1 = arith.extui %0 : i1 to i32
    %c0_i32_0 = arith.constant 0 : i32
    %2 = arith.cmpi ne, %1, %c0_i32_0 : i32
    scf.if %2 {
      %cst_9 = arith.constant 0.000000e+00 : f32
      %12 = vector.broadcast %cst_9 : f32 to vector<8x128xf32>
      %c0_10 = arith.constant 0 : index
      %c0_11 = arith.constant 0 : index
      %13 = vector.load %arg7[%c0_10, %c0_11] : memref<8x128xf32, #tpu.memory_space<vmem>>, vector<8x128xf32>
      tpu.vector_store %arg7[%c0_10, %c0_11], %12 {strides = array<i32>} : memref<8x128xf32, #tpu.memory_space<vmem>>, vector<8x128xf32>,
    } else {
    }
    %c0 = arith.constant 0 : index
    %c0_1 = arith.constant 0 : index
    %3 = vector.load %arg7[%c0, %c0_1] : memref<8x128xf32, #tpu.memory_space<vmem>>, vector<8x128xf32>
    %c0_2 = arith.constant 0 : index
    %c0_3 = arith.constant 0 : index
    %4 = vector.load %arg3[%c0_2, %c0_3] : memref<8x512xf32, #tpu.memory_space<vmem>>, vector<8x512xf32>
    %c0_4 = arith.constant 0 : index
    %c0_5 = arith.constant 0 : index
    %5 = vector.load %arg4[%c0_4, %c0_5] : memref<512x128xf32, #tpu.memory_space<vmem>>, vector<512x128xf32>
    %cst = arith.constant dense<0.000000e+00> : vector<8x128xf32>
    %6 = tpu.matmul %4, %5, %cst {dimension_numbers = #tpu.dot_dimension_numbers<[1], [0], [0], [1], [0, 0, 1, 1], [], []>} : vector<8x512xf32>, vector<512x128xf32>, vector<8x128xf32> -> vector<8x128xf32>
    %7 = arith.addf %3, %6 : vector<8x128xf32>
    %c0_6 = arith.constant 0 : index
    %c0_7 = arith.constant 0 : index
    %8 = vector.load %arg7[%c0_6, %c0_7] : memref<8x128xf32, #tpu.memory_space<vmem>>, vector<8x128xf32>
    tpu.vector_store %arg7[%c0_6, %c0_7], %7 {strides = array<i32>} : memref<8x128xf32, #tpu.memory_space<vmem>>, vector<8x128xf32>,
    %c1_i32 = arith.constant 1 : i32
    %9 = arith.cmpi eq, %arg2, %c1_i32 : i32
    %10 = arith.extui %9 : i1 to i32
    %c0_i32_8 = arith.constant 0 : i32
    %11 = arith.cmpi ne, %10, %c0_i32_8 : i32
    scf.if %11 {
      %c0_9 = arith.constant 0 : index
      %c0_10 = arith.constant 0 : index
      %12 = vector.load %arg7[%c0_9, %c0_10] : memref<8x128xf32, #tpu.memory_space<vmem>>, vector<8x128xf32>
      %c0_11 = arith.constant 0 : index
      %c0_12 = arith.constant 0 : index
      %13 = vector.load %arg5[%c0_11, %c0_12] : memref<1x128xf32, #tpu.memory_space<vmem>>, vector<1x128xf32>
      %14 = vector.broadcast %13 : vector<1x128xf32> to vector<8x128xf32>
      %15 = arith.addf %12, %14 : vector<8x128xf32>
      %c0_13 = arith.constant 0 : index
      %c0_14 = arith.constant 0 : index
      %16 = vector.load %arg6[%c0_13, %c0_14] : memref<8x128xf32, #tpu.memory_space<vmem>>, vector<8x128xf32>
      tpu.vector_store %arg6[%c0_13, %c0_14], %15 {strides = array<i32>} : memref<8x128xf32, #tpu.memory_space<vmem>>, vector<8x128xf32>,
    } else {
    }
    return
  }
  func.func @transform_0(%arg0: i32, %arg1: i32, %arg2: i32) -> (i32, i32) {
    %c0_i32 = arith.constant 0 : i32
    return %arg0, %arg2 : i32, i32
  }
  func.func @transform_1(%arg0: i32, %arg1: i32, %arg2: i32) -> (i32, i32) {
    %c0_i32 = arith.constant 0 : i32
    return %arg2, %arg1 : i32, i32
  }
  func.func @transform_2(%arg0: i32, %arg1: i32, %arg2: i32) -> (i32, i32) {
    %c0_i32 = arith.constant 0 : i32
    %c0_i32_0 = arith.constant 0 : i32
    return %c0_i32, %arg1 : i32, i32
  }
  func.func @transform_3(%arg0: i32, %arg1: i32, %arg2: i32) -> (i32, i32) {
    %c0_i32 = arith.constant 0 : i32
    return %arg0, %arg1 : i32, i32
  }
}

</mosaic_0001>

<llo_original>
// kernel: mul.9
$region0: #{mul.9}
  #allocation0 [shape = 's32[1]{0}', space=sflag, size = 0x4, scoped, tag = 'scoped memory for mul.9']
  %s0 = inlined_call_operand.vmem [shape: f32[1024], index: 0, kind: input, shape index: {}]
  %s1 = inlined_call_operand.vmem [shape: f32[1024], index: 1, kind: input, shape index: {}]
  %s2 = inlined_call_operand.vmem [shape: f32[1024], index: 2, kind: output, shape index: {}]
  %v3 = vld [vmem:[%s0] sm:$0xff]
  %v4 = vld [vmem:[%s1] sm:$0xff]
  %5 = xla_tuple %v3, %v4
  %6 = xla_tuple %5
  %v7 = vmul.f32 %v3, %v4
  %8 = xla_tuple %v7
  %9 = vst [vmem:[%s2] sm:$0xff] %v7

// kernel: sub.1
$region0: #{sub.1}
  #allocation0 [shape = 's32[1]{0}', space=sflag, size = 0x4, scoped, tag = 'scoped memory for sub.1']
  %s0 = inlined_call_operand.vmem [shape: f32[32], index: 0, kind: input, shape index: {}]
  %s1 = inlined_call_operand.vmem [shape: f32[32], index: 1, kind: input, shape index: {}]
  %s2 = inlined_call_operand.vmem [shape: f32[32], index: 2, kind: output, shape index: {}]
  %v3 = vld [vmem:[%s0] sm:$0x1]
  %v4 = vld [vmem:[%s1] sm:$0x1]
  %5 = xla_tuple %v3, %v4
  %6 = xla_tuple %5
  %v7 = vsub.f32 %v3, %v4
  %8 = xla_tuple %v7
  %9 = vst [vmem:[%s2] sm:$0x1] %v7

// kernel: normalized_model_forward.1
$region0: #{normalized_model_forward.1}
  #allocation0 [shape = 'u32[]', space=smem, size = 0x4, offset = 0x4, fixed_abs, tag = 'smem constant byte address 0x4 - core index']
  #allocation1 [shape = 'u32[144,128]{1,0:T(1,128)}', space=vmem, size = 0x12000, scoped, tag = 'internal scratch']
  #allocation2 [shape = 'f32[8,128]{1,0:T(8,128)}', space=vmem, size = 0x1000, scoped, tag = 'scratch operand']
  %s0 = inlined_call_operand.vmem [shape: f32[8,1024], index: 0, kind: input, shape index: {}]
  %s1 = inlined_call_operand.vmem [shape: f32[1024,128], index: 1, kind: input, shape index: {}]
  %s2 = inlined_call_operand.vmem [shape: f32[1,128], index: 2, kind: input, shape index: {}]
  %s3 = inlined_call_operand.vmem [shape: f32[8,128], index: 3, kind: output, shape index: {}]
  %s4 = sld [smem:[#allocation0]]
  $region53: #{normalized_model_forward.1} parent=0
    _
  %s6 = ssub.s32 1, %s4
  %s7 = scalar_select 0, %s6, %s4
  loop: start=0, step=1, limit=4
  $region2: #{normalized_model_forward.1} parent=0 // loop_pre_header
    _
  $region3: #{normalized_model_forward.1} parent=0 // loop_header
    %s9 = sphi 0, %s13
    %p10 = scmp.ge.s32.totalorder %s9, 4
    %s16 = sphi 0, %s35
    %s17 = sphi 0, %s31
    %s18 = sphi 0, %s27
    %s19 = sphi 0, %s16
    %s20 = sphi 0, %s17
    %s21 = sphi 0, %s18
    %s22 = sphi 0, %s19
    %s23 = sphi 0, %s20
    %s24 = sphi 0, %s21
    %s40 = sphi 0, %s42
    %s43 = sphi 0, %s40
    %s44 = sphi 0, %s43
    %s60 = sphi 0, %s44
    %s68 = sphi 0, %s70
    %s71 = sphi 0, %s68
    %s72 = sphi 0, %s71
    %s88 = sphi 0, %s72
    %s94 = sphi 0, %s96
    %s97 = sphi 0, %s94
    %s98 = sphi 0, %s97
    %s114 = sphi 0, %s98
    %s122 = sphi 0, %s124
    %s125 = sphi 0, %s122
    %s126 = sphi 0, %s125
    %s142 = sphi 0, %s126
  $region4: #{normalized_model_forward.1} parent=0 // loop_header_branch
    %12 = sbr.rel (%p10) target = $region8
  $region5: #{normalized_model_forward.1} parent=0 // loop_body
    %s14 = ssub.s32 %s9, 1
    %s15 = ssub.s32 %s9, 2
    %s25 = sadd.s32 1, %s18
    %p26 = scmp.ge.s32.totalorder %s25, 2
    %s27 = scalar_select %p26, 0, %s25
    %s28 = sadd.s32 1, %s17
    %s29 = scalar_select %p26, %s28, %s17
    %p30 = scmp.ge.s32.totalorder %s29, 1
    %s31 = scalar_select %p30, 0, %s29
    %s32 = sadd.s32 1, %s16
    %s33 = scalar_select %p30, %s32, %s16
    %p34 = scmp.ge.s32.totalorder %s33, 1
    %s35 = scalar_select %p34, 0, %s33
    %s36 = ssub.s32 %s16, %s35
    %s37 = ssub.s32 %s18, %s27
    %s38 = sor.u32 %s36, %s37
    %p39 = scmp.eq.s32.totalorder %s38, 0
    %s41 = sadd.s32 %s40, 1
    %s42 = scalar_select %p39, %s40, %s41
    %p45 = pneg %p39
    %p46 = scmp.eq.s32.totalorder %s9, 1
    %p47 = por %p45, %p46
    %p48 = scmp.ne.s32.totalorder %s40, %s43
    %p49 = scmp.eq.s32.totalorder %s9, 0
    %p50 = por %p48, %p49
    %p51 = scmp.ne.s32.totalorder %s40, %s43
    %p52 = scmp.eq.s32.totalorder %s14, 1
    %p53 = por %p51, %p52
    %p54 = scmp.ne.s32.totalorder %s43, %s44
    %p55 = scmp.eq.s32.totalorder %s14, 0
    %p56 = por %p54, %p55
    %p57 = scmp.ne.s32.totalorder %s43, %s44
    %p58 = scmp.eq.s32.totalorder %s15, 1
    %p59 = por %p57, %p58
    %p61 = scmp.ne.s32.totalorder %s44, %s60
    %p62 = scmp.eq.s32.totalorder %s15, 0
    %p63 = por %p61, %p62
    %s64 = ssub.s32 %s18, %s27
    %s65 = ssub.s32 %s17, %s31
    %s66 = sor.u32 %s64, %s65
    %p67 = scmp.eq.s32.totalorder %s66, 0
    %s69 = sadd.s32 %s68, 1
    %s70 = scalar_select %p67, %s68, %s69
    %p73 = pneg %p67
    %p74 = scmp.eq.s32.totalorder %s9, 1
    %p75 = por %p73, %p74
    %p76 = scmp.ne.s32.totalorder %s68, %s71
    %p77 = scmp.eq.s32.totalorder %s9, 0
    %p78 = por %p76, %p77
    %p79 = scmp.ne.s32.totalorder %s68, %s71
    %p80 = scmp.eq.s32.totalorder %s14, 1
    %p81 = por %p79, %p80
    %p82 = scmp.ne.s32.totalorder %s71, %s72
    %p83 = scmp.eq.s32.totalorder %s14, 0
    %p84 = por %p82, %p83
    %p85 = scmp.ne.s32.totalorder %s71, %s72
    %p86 = scmp.eq.s32.totalorder %s15, 1
    %p87 = por %p85, %p86
    %p89 = scmp.ne.s32.totalorder %s72, %s88
    %p90 = scmp.eq.s32.totalorder %s15, 0
    %p91 = por %p89, %p90
    %s92 = ssub.s32 %s17, %s31
    %p93 = scmp.eq.s32.totalorder %s92, 0
    %s95 = sadd.s32 %s94, 1
    %s96 = scalar_select %p93, %s94, %s95
    %p99 = pneg %p93
    %p100 = scmp.eq.s32.totalorder %s9, 1
    %p101 = por %p99, %p100
    %p102 = scmp.ne.s32.totalorder %s94, %s97
    %p103 = scmp.eq.s32.totalorder %s9, 0
    %p104 = por %p102, %p103
    %p105 = scmp.ne.s32.totalorder %s94, %s97
    %p106 = scmp.eq.s32.totalorder %s14, 1
    %p107 = por %p105, %p106
    %p108 = scmp.ne.s32.totalorder %s97, %s98
    %p109 = scmp.eq.s32.totalorder %s14, 0
    %p110 = por %p108, %p109
    %p111 = scmp.ne.s32.totalorder %s97, %s98
    %p112 = scmp.eq.s32.totalorder %s15, 1
    %p113 = por %p111, %p112
    %p115 = scmp.ne.s32.totalorder %s98, %s114
    %p116 = scmp.eq.s32.totalorder %s15, 0
    %p117 = por %p115, %p116
    %s118 = ssub.s32 %s16, %s35
    %s119 = ssub.s32 %s17, %s31
    %s120 = sor.u32 %s118, %s119
    %p121 = scmp.eq.s32.totalorder %s120, 0
    %s123 = sadd.s32 %s122, 1
    %s124 = scalar_select %p121, %s122, %s123
    %p127 = pneg %p121
    %p128 = scmp.eq.s32.totalorder %s9, 1
    %p129 = por %p127, %p128
    %p130 = scmp.ne.s32.totalorder %s122, %s125
    %p131 = scmp.eq.s32.totalorder %s9, 0
    %p132 = por %p130, %p131
    %p133 = scmp.ne.s32.totalorder %s122, %s125
    %p134 = scmp.eq.s32.totalorder %s14, 1
    %p135 = por %p133, %p134
    %p136 = scmp.ne.s32.totalorder %s125, %s126
    %p137 = scmp.eq.s32.totalorder %s14, 0
    %p138 = por %p136, %p137
    %p139 = scmp.ne.s32.totalorder %s125, %s126
    %p140 = scmp.eq.s32.totalorder %s15, 1
    %p141 = por %p139, %p140
    %p143 = scmp.ne.s32.totalorder %s126, %s142
    %p144 = scmp.eq.s32.totalorder %s15, 0
    %p145 = por %p143, %p144
    %p146 = scmp.le.s32.totalorder 1, %s9
    %p147 = scmp.lt.s32.totalorder %s9, 3
    %p148 = pnand %p146, %p147
    %p149 = pneg %p148
    // Predicated region
    $region9: #{normalized_model_forward.1} parent=5 // pred_check
      _
    $region10: #{normalized_model_forward.1} parent=5 // pred_check_branch
      %151 = sbr.rel (%p148) target = $region12
    $region11: #{normalized_model_forward.1} parent=5 // pred_region
      %s152 = ssub.s32 %s9, 1
      // Predicated region
      $region13: #{normalized_model_forward.1} parent=11 // pred_check
        %p153 = pneg %p110
      $region14: #{normalized_model_forward.1} parent=11 // pred_check_branch
        %155 = sbr.rel (%p153) target = $region16
      $region15: #{normalized_model_forward.1} parent=11 // pred_region
        %p156 = scmp.lt.s32.totalorder %s20, 0
        %s157 = scalar_select %p156, %s20, 0
        %s158 = scalar_lea.vmem %s2, %s157
      $region16: #{normalized_model_forward.1} parent=11 // pred_fallthru
        _
    $region12: #{normalized_model_forward.1} parent=5 // pred_fallthru
      _
    %p159 = scmp.lt.s32.totalorder %s9, 2
    // Predicated region
    $region17: #{normalized_model_forward.1} parent=5 // pred_check
      %p160 = pneg %p159
    $region18: #{normalized_model_forward.1} parent=5 // pred_check_branch
      %162 = sbr.rel (%p160) target = $region20
    $region19: #{normalized_model_forward.1} parent=5 // pred_region
      // Predicated region
      $region21: #{normalized_model_forward.1} parent=19 // pred_check
        %p163 = pneg %p50
      $region22: #{normalized_model_forward.1} parent=19 // pred_check_branch
        %165 = sbr.rel (%p163) target = $region24
      $region23: #{normalized_model_forward.1} parent=19 // pred_region
        %s166 = smul.u32 4, %s18
        %p167 = scmp.lt.s32.totalorder %s16, 0
        %s168 = scalar_select %p167, %s16, 0
        %p169 = scmp.lt.s32.totalorder %s166, 7
        %s170 = scalar_select %p169, %s166, 7
        %s171 = smul.addr %s168, 8
        %s172 = sadd.s32 %s170, %s171
        %s173 = smul.addr %s172, 8
        %s174 = scalar_lea.vmem %s0, %s173
        %s175 = smul.u32 4, %s18
      $region24: #{normalized_model_forward.1} parent=19 // pred_fallthru
        _
      // Predicated region
      $region25: #{normalized_model_forward.1} parent=19 // pred_check
        %p176 = pneg %p78
      $region26: #{normalized_model_forward.1} parent=19 // pred_check_branch
        %178 = sbr.rel (%p176) target = $region28
      $region27: #{normalized_model_forward.1} parent=19 // pred_region
        %s179 = smul.u32 64, %s18
        %p180 = scmp.lt.s32.totalorder %s179, 127
        %s181 = scalar_select %p180, %s179, 127
        %p182 = scmp.lt.s32.totalorder %s17, 0
        %s183 = scalar_select %p182, %s17, 0
        %s184 = sadd.s32 %s183, %s181
        %s185 = smul.addr %s184, 8
        %s186 = scalar_lea.vmem %s1, %s185
        %s187 = smul.u32 64, %s18
      $region28: #{normalized_model_forward.1} parent=19 // pred_fallthru
        _
    $region20: #{normalized_model_forward.1} parent=5 // pred_fallthru
      _
    %p188 = scmp.le.s32.totalorder 1, %s9
    %p189 = scmp.lt.s32.totalorder %s9, 3
    %p190 = pnand %p188, %p189
    %p191 = pneg %p190
    // Predicated region
    $region29: #{normalized_model_forward.1} parent=5 // pred_check
      _
    $region30: #{normalized_model_forward.1} parent=5 // pred_check_branch
      %193 = sbr.rel (%p190) target = $region32
    $region31: #{normalized_model_forward.1} parent=5 // pred_region
      %s194 = ssub.s32 %s9, 1
      %s195 = smul.u32 4, %s21
      %p196 = scmp.lt.s32.totalorder %s19, 0
      %s197 = scalar_select %p196, %s19, 0
      %p198 = scmp.lt.s32.totalorder %s195, 7
      %s199 = scalar_select %p198, %s195, 7
      %s200 = smul.addr %s197, 8
      %s201 = sadd.s32 %s199, %s200
      %s202 = smul.addr %s201, 8
      %s203 = scalar_lea.vmem %s0, %s202
      %p204 = pneg %p56
      %p205 = pneg %p53
      %s206 = smul.u32 64, %s21
      %p207 = scmp.lt.s32.totalorder %s206, 127
      %s208 = scalar_select %p207, %s206, 127
      %p209 = scmp.lt.s32.totalorder %s20, 0
      %s210 = scalar_select %p209, %s20, 0
      %s211 = sadd.s32 %s210, %s208
      %s212 = smul.addr %s211, 8
      %s213 = scalar_lea.vmem %s1, %s212
      %p214 = pneg %p84
      %p215 = pneg %p81
      %p216 = scmp.lt.s32.totalorder %s20, 0
      %s217 = scalar_select %p216, %s20, 0
      %s218 = scalar_lea.vmem %s2, %s217
      %p219 = pneg %p110
      %p220 = pneg %p107
      %p221 = pneg %p138
      %p222 = pneg %p135
      %p223 = scmp.lt.s32.totalorder %s19, 0
      %s224 = scalar_select %p223, %s19, 0
      %p225 = scmp.lt.s32.totalorder %s20, 0
      %s226 = scalar_select %p225, %s20, 0
      %s227 = sadd.s32 %s226, %s224
      %s228 = smul.addr %s227, 8
      %s229 = scalar_lea.vmem %s3, %s228
      %s230 = smul.u32 4, %s21
      %p231 = scmp.lt.s32.totalorder %s19, 0
      %s232 = scalar_select %p231, %s19, 0
      %p233 = scmp.lt.s32.totalorder %s230, 7
      %s234 = scalar_select %p233, %s230, 7
      %s235 = smul.addr %s232, 8
      %s236 = sadd.s32 %s234, %s235
      %s237 = smul.addr %s236, 8
      %s238 = scalar_lea.vmem %s0, %s237
      %s239 = smul.u32 4, %s21
      %s240 = smul.u32 64, %s21
      %p241 = scmp.lt.s32.totalorder %s240, 127
      %s242 = scalar_select %p241, %s240, 127
      %p243 = scmp.lt.s32.totalorder %s20, 0
      %s244 = scalar_select %p243, %s20, 0
      %s245 = sadd.s32 %s244, %s242
      %s246 = smul.addr %s245, 8
      %s247 = scalar_lea.vmem %s1, %s246
      %s248 = smul.u32 64, %s21
      %p249 = scmp.lt.s32.totalorder %s20, 0
      %s250 = scalar_select %p249, %s20, 0
      %s251 = scalar_lea.vmem %s2, %s250
      %p252 = scmp.lt.s32.totalorder %s19, 0
      %s253 = scalar_select %p252, %s19, 0
      %p254 = scmp.lt.s32.totalorder %s20, 0
      %s255 = scalar_select %p254, %s20, 0
      %s256 = sadd.s32 %s255, %s253
      %s257 = smul.addr %s256, 8
      %s258 = scalar_lea.vmem %s3, %s257
      %p259 = scmp.eq.s32.totalorder %s21, 0
      // Predicated region
      $region33: #{normalized_model_forward.1} parent=31 // pred_check
        %p260 = pneg %p259
      $region34: #{normalized_model_forward.1} parent=31 // pred_check_branch
        %262 = sbr.rel (%p260) target = $region36
      $region35: #{normalized_model_forward.1} parent=31 // pred_region
        %263 = vst [vmem:[#allocation2] sm:$0xff] 0.0
      $region36: #{normalized_model_forward.1} parent=31 // pred_fallthru
        _
      %v264 = vld [vmem:[#allocation2] sm:$0xff]
      %v265 = vld [vmem:[%s238] sm:$0xff]
      %v266 = vld [vmem:[%s238 + $0x8] sm:$0xff]
      %v267 = vld [vmem:[%s238 + $0x10] sm:$0xff]
      %v268 = vld [vmem:[%s238 + $0x18] sm:$0xff]
      %v269 = vld [vmem:[%s247] sm:$0xff]
      %v270 = vld [vmem:[%s247 + $0x8] sm:$0xff]
      %v271 = vld [vmem:[%s247 + $0x10] sm:$0xff]
      %v272 = vld [vmem:[%s247 + $0x18] sm:$0xff]
      %v273 = vld [vmem:[%s247 + $0x20] sm:$0xff]
      %v274 = vld [vmem:[%s247 + $0x28] sm:$0xff]
      %v275 = vld [vmem:[%s247 + $0x30] sm:$0xff]
      %v276 = vld [vmem:[%s247 + $0x38] sm:$0xff]
      %v277 = vld [vmem:[%s247 + $0x40] sm:$0xff]
      %v278 = vld [vmem:[%s247 + $0x48] sm:$0xff]
      %v279 = vld [vmem:[%s247 + $0x50] sm:$0xff]
      %v280 = vld [vmem:[%s247 + $0x58] sm:$0xff]
      %v281 = vld [vmem:[%s247 + $0x60] sm:$0xff]
      %v282 = vld [vmem:[%s247 + $0x68] sm:$0xff]
      %v283 = vld [vmem:[%s247 + $0x70] sm:$0xff]
      %v284 = vld [vmem:[%s247 + $0x78] sm:$0xff]
      %v285 = vld [vmem:[%s247 + $0x80] sm:$0xff]
      %v286 = vld [vmem:[%s247 + $0x88] sm:$0xff]
      %v287 = vld [vmem:[%s247 + $0x90] sm:$0xff]
      %v288 = vld [vmem:[%s247 + $0x98] sm:$0xff]
      %v289 = vld [vmem:[%s247 + $0xa0] sm:$0xff]
      %v290 = vld [vmem:[%s247 + $0xa8] sm:$0xff]
      %v291 = vld [vmem:[%s247 + $0xb0] sm:$0xff]
      %v292 = vld [vmem:[%s247 + $0xb8] sm:$0xff]
      %v293 = vld [vmem:[%s247 + $0xc0] sm:$0xff]
      %v294 = vld [vmem:[%s247 + $0xc8] sm:$0xff]
      %v295 = vld [vmem:[%s247 + $0xd0] sm:$0xff]
      %v296 = vld [vmem:[%s247 + $0xd8] sm:$0xff]
      %v297 = vld [vmem:[%s247 + $0xe0] sm:$0xff]
      %v298 = vld [vmem:[%s247 + $0xe8] sm:$0xff]
      %v299 = vld [vmem:[%s247 + $0xf0] sm:$0xff]
      %v300 = vld [vmem:[%s247 + $0xf8] sm:$0xff]
      %v301 = vld [vmem:[%s247 + $0x100] sm:$0xff]
      %v302 = vld [vmem:[%s247 + $0x108] sm:$0xff]
      %v303 = vld [vmem:[%s247 + $0x110] sm:$0xff]
      %v304 = vld [vmem:[%s247 + $0x118] sm:$0xff]
      %v305 = vld [vmem:[%s247 + $0x120] sm:$0xff]
      %v306 = vld [vmem:[%s247 + $0x128] sm:$0xff]
      %v307 = vld [vmem:[%s247 + $0x130] sm:$0xff]
      %v308 = vld [vmem:[%s247 + $0x138] sm:$0xff]
      %v309 = vld [vmem:[%s247 + $0x140] sm:$0xff]
      %v310 = vld [vmem:[%s247 + $0x148] sm:$0xff]
      %v311 = vld [vmem:[%s247 + $0x150] sm:$0xff]
      %v312 = vld [vmem:[%s247 + $0x158] sm:$0xff]
      %v313 = vld [vmem:[%s247 + $0x160] sm:$0xff]
      %v314 = vld [vmem:[%s247 + $0x168] sm:$0xff]
      %v315 = vld [vmem:[%s247 + $0x170] sm:$0xff]
      %v316 = vld [vmem:[%s247 + $0x178] sm:$0xff]
      %v317 = vld [vmem:[%s247 + $0x180] sm:$0xff]
      %v318 = vld [vmem:[%s247 + $0x188] sm:$0xff]
      %v319 = vld [vmem:[%s247 + $0x190] sm:$0xff]
      %v320 = vld [vmem:[%s247 + $0x198] sm:$0xff]
      %v321 = vld [vmem:[%s247 + $0x1a0] sm:$0xff]
      %v322 = vld [vmem:[%s247 + $0x1a8] sm:$0xff]
      %v323 = vld [vmem:[%s247 + $0x1b0] sm:$0xff]
      %v324 = vld [vmem:[%s247 + $0x1b8] sm:$0xff]
      %v325 = vld [vmem:[%s247 + $0x1c0] sm:$0xff]
      %v326 = vld [vmem:[%s247 + $0x1c8] sm:$0xff]
      %v327 = vld [vmem:[%s247 + $0x1d0] sm:$0xff]
      %v328 = vld [vmem:[%s247 + $0x1d8] sm:$0xff]
      %v329 = vld [vmem:[%s247 + $0x1e0] sm:$0xff]
      %v330 = vld [vmem:[%s247 + $0x1e8] sm:$0xff]
      %v331 = vld [vmem:[%s247 + $0x1f0] sm:$0xff]
      %v332 = vld [vmem:[%s247 + $0x1f8] sm:$0xff]
      %333 = vmatprep.subr.mxu0 0.0
      %334 = vmatpush1.msra.mxu0 %v269
      %335 = vmatprep.subr.mxu0 0.0
      %336 = vmatpush1.msra.mxu0 %v270
      %337 = vmatprep.subr.mxu0 0.0
      %338 = vmatpush1.msra.mxu0 %v271
      %339 = vmatprep.subr.mxu0 0.0
      %340 = vmatpush1.msra.mxu0 %v272
      %341 = vmatprep.subr.mxu0 0.0
      %342 = vmatpush1.msra.mxu0 %v273
      %343 = vmatprep.subr.mxu0 0.0
      %344 = vmatpush1.msra.mxu0 %v274
      %345 = vmatprep.subr.mxu0 0.0
      %346 = vmatpush1.msra.mxu0 %v275
      %347 = vmatprep.subr.mxu0 0.0
      %348 = vmatpush1.msra.mxu0 %v276
      %349 = vmatprep.subr.mxu0 0.0
      %350 = vmatpush1.msra.mxu0 %v277
      %351 = vmatprep.subr.mxu0 0.0
      %352 = vmatpush1.msra.mxu0 %v278
      %353 = vmatprep.subr.mxu0 0.0
      %354 = vmatpush1.msra.mxu0 %v279
      %355 = vmatprep.subr.mxu0 0.0
      %356 = vmatpush1.msra.mxu0 %v280
      %357 = vmatprep.subr.mxu0 0.0
      %358 = vmatpush1.msra.mxu0 %v281
      %359 = vmatprep.subr.mxu0 0.0
      %360 = vmatpush1.msra.mxu0 %v282
      %361 = vmatprep.subr.mxu0 0.0
      %362 = vmatpush1.msra.mxu0 %v283
      %363 = vmatprep.subr.mxu0 0.0
      %364 = vmatpush1.msra.mxu0 %v284
      %365 = vmatprep.subr.mxu0 0.0
      %366 = vmatpush1.msra.mxu0 %v285
      %367 = vmatprep.subr.mxu0 0.0
      %368 = vmatpush1.msra.mxu0 %v286
      %369 = vmatprep.subr.mxu0 0.0
      %370 = vmatpush1.msra.mxu0 %v287
      %371 = vmatprep.subr.mxu0 0.0
      %372 = vmatpush1.msra.mxu0 %v288
      %373 = vmatprep.subr.mxu0 0.0
      %374 = vmatpush1.msra.mxu0 %v289
      %375 = vmatprep.subr.mxu0 0.0
      %376 = vmatpush1.msra.mxu0 %v290
      %377 = vmatprep.subr.mxu0 0.0
      %378 = vmatpush1.msra.mxu0 %v291
      %379 = vmatprep.subr.mxu0 0.0
      %380 = vmatpush1.msra.mxu0 %v292
      %381 = vmatprep.subr.mxu0 0.0
      %382 = vmatpush1.msra.mxu0 %v293
      %383 = vmatprep.subr.mxu0 0.0
      %384 = vmatpush1.msra.mxu0 %v294
      %385 = vmatprep.subr.mxu0 0.0
      %386 = vmatpush1.msra.mxu0 %v295
      %387 = vmatprep.subr.mxu0 0.0
      %388 = vmatpush1.msra.mxu0 %v296
      %389 = vmatprep.subr.mxu0 0.0
      %390 = vmatpush1.msra.mxu0 %v297
      %391 = vmatprep.subr.mxu0 0.0
      %392 = vmatpush1.msra.mxu0 %v298
      %393 = vmatprep.subr.mxu0 0.0
      %394 = vmatpush1.msra.mxu0 %v299
      %395 = vmatprep.subr.mxu0 0.0
      %396 = vmatpush1.msra.mxu0 %v300
      %397 = vmatprep.mubr.f32.mxu0 %v266
      %398 = vmatmul.mubr.f32.gmra.mrb[0].mxu0 %v265
      %v399 = vpop.f32.mrb[0].mxu0
      %v400 = vadd.f32 0.0, %v399
      %v401 = vpop.f32.mrb[0].mxu0
      %402 = vdwg.mxu0
      %403 = vmatprep.subr.mxu0 0.0
      %404 = vmatpush1.msra.mxu0 %v301
      %405 = vmatprep.subr.mxu0 0.0
      %406 = vmatpush1.msra.mxu0 %v302
      %407 = vmatprep.subr.mxu0 0.0
      %408 = vmatpush1.msra.mxu0 %v303
      %409 = vmatprep.subr.mxu0 0.0
      %410 = vmatpush1.msra.mxu0 %v304
      %411 = vmatprep.subr.mxu0 0.0
      %412 = vmatpush1.msra.mxu0 %v305
      %413 = vmatprep.subr.mxu0 0.0
      %414 = vmatpush1.msra.mxu0 %v306
      %415 = vmatprep.subr.mxu0 0.0
      %416 = vmatpush1.msra.mxu0 %v307
      %417 = vmatprep.subr.mxu0 0.0
      %418 = vmatpush1.msra.mxu0 %v308
      %419 = vmatprep.subr.mxu0 0.0
      %420 = vmatpush1.msra.mxu0 %v309
      %421 = vmatprep.subr.mxu0 0.0
      %422 = vmatpush1.msra.mxu0 %v310
      %423 = vmatprep.subr.mxu0 0.0
      %424 = vmatpush1.msra.mxu0 %v311
      %425 = vmatprep.subr.mxu0 0.0
      %426 = vmatpush1.msra.mxu0 %v312
      %427 = vmatprep.subr.mxu0 0.0
      %428 = vmatpush1.msra.mxu0 %v313
      %429 = vmatprep.subr.mxu0 0.0
      %430 = vmatpush1.msra.mxu0 %v314
      %431 = vmatprep.subr.mxu0 0.0
      %432 = vmatpush1.msra.mxu0 %v315
      %433 = vmatprep.subr.mxu0 0.0
      %434 = vmatpush1.msra.mxu0 %v316
      %435 = vmatprep.subr.mxu0 0.0
      %436 = vmatpush1.msra.mxu0 %v317
      %437 = vmatprep.subr.mxu0 0.0
      %438 = vmatpush1.msra.mxu0 %v318
      %439 = vmatprep.subr.mxu0 0.0
      %440 = vmatpush1.msra.mxu0 %v319
      %441 = vmatprep.subr.mxu0 0.0
      %442 = vmatpush1.msra.mxu0 %v320
      %443 = vmatprep.subr.mxu0 0.0
      %444 = vmatpush1.msra.mxu0 %v321
      %445 = vmatprep.subr.mxu0 0.0
      %446 = vmatpush1.msra.mxu0 %v322
      %447 = vmatprep.subr.mxu0 0.0
      %448 = vmatpush1.msra.mxu0 %v323
      %449 = vmatprep.subr.mxu0 0.0
      %450 = vmatpush1.msra.mxu0 %v324
      %451 = vmatprep.subr.mxu0 0.0
      %452 = vmatpush1.msra.mxu0 %v325
      %453 = vmatprep.subr.mxu0 0.0
      %454 = vmatpush1.msra.mxu0 %v326
      %455 = vmatprep.subr.mxu0 0.0
      %456 = vmatpush1.msra.mxu0 %v327
      %457 = vmatprep.subr.mxu0 0.0
      %458 = vmatpush1.msra.mxu0 %v328
      %459 = vmatprep.subr.mxu0 0.0
      %460 = vmatpush1.msra.mxu0 %v329
      %461 = vmatprep.subr.mxu0 0.0
      %462 = vmatpush1.msra.mxu0 %v330
      %463 = vmatprep.subr.mxu0 0.0
      %464 = vmatpush1.msra.mxu0 %v331
      %465 = vmatprep.subr.mxu0 0.0
      %466 = vmatpush1.msra.mxu0 %v332
      %467 = vmatprep.mubr.f32.mxu0 %v268
      %468 = vmatmul.mubr.f32.gmra.mrb[0].mxu0 %v267
      %v469 = vpop.f32.mrb[0].mxu0
      %v470 = vadd.f32 %v400, %v469
      %v471 = vpop.f32.mrb[0].mxu0
      %472 = vdwg.mxu0
      %v473 = vadd.f32 %v264, %v470
      %474 = vst [vmem:[#allocation2] sm:$0xff] %v473
      %p475 = scmp.eq.s32.totalorder %s21, 1
      // Predicated region
      $region37: #{normalized_model_forward.1} parent=31 // pred_check
        %p476 = pneg %p475
      $region38: #{normalized_model_forward.1} parent=31 // pred_check_branch
        %478 = sbr.rel (%p476) target = $region40
      $region39: #{normalized_model_forward.1} parent=31 // pred_region
        %v479 = vld [vmem:[#allocation2] sm:$0xff]
        %v480 = vld [vmem:[%s251] sm:$0x1]
        %v482 = vlaneseq
        %v483 = vshrl.u32 %v482, 7
        %v484 = vsub.s32 0, %v483
        %v485 = vrot.slane %v480, %v484
        %v487 = vadd.f32 %v479, %v485
        %488 = vst [vmem:[%s258] sm:$0xff] %v487
      $region40: #{normalized_model_forward.1} parent=31 // pred_fallthru
        _
      %p489 = scmp.lt.s32.totalorder %s19, 0
      %s490 = scalar_select %p489, %s19, 0
      %p491 = scmp.lt.s32.totalorder %s20, 0
      %s492 = scalar_select %p491, %s20, 0
      %s493 = sadd.s32 %s492, %s490
      %s494 = smul.addr %s493, 8
      %s495 = scalar_lea.vmem %s3, %s494
      // Predicated region
      $region41: #{normalized_model_forward.1} parent=31 // pred_check
        %p496 = pneg %p135
      $region42: #{normalized_model_forward.1} parent=31 // pred_check_branch
        %498 = sbr.rel (%p496) target = $region44
      $region43: #{normalized_model_forward.1} parent=31 // pred_region
        _
      $region44: #{normalized_model_forward.1} parent=31 // pred_fallthru
        _
      // Predicated region
      $region45: #{normalized_model_forward.1} parent=31 // pred_check
        %p499 = pneg %p135
      $region46: #{normalized_model_forward.1} parent=31 // pred_check_branch
        %501 = sbr.rel (%p499) target = $region48
      $region47: #{normalized_model_forward.1} parent=31 // pred_region
        %p502 = scmp.lt.s32.totalorder %s19, 0
        %s503 = scalar_select %p502, %s19, 0
        %p504 = scmp.lt.s32.totalorder %s20, 0
        %s505 = scalar_select %p504, %s20, 0
        %s506 = sadd.s32 %s505, %s503
        %s507 = smul.addr %s506, 8
        %s508 = scalar_lea.vmem %s3, %s507
      $region48: #{normalized_model_forward.1} parent=31 // pred_fallthru
        _
    $region32: #{normalized_model_forward.1} parent=5 // pred_fallthru
      _
    %p509 = scmp.le.s32.totalorder 2, %s9
    // Predicated region
    $region49: #{normalized_model_forward.1} parent=5 // pred_check
      %p510 = pneg %p509
    $region50: #{normalized_model_forward.1} parent=5 // pred_check_branch
      %512 = sbr.rel (%p510) target = $region52
    $region51: #{normalized_model_forward.1} parent=5 // pred_region
      %s513 = ssub.s32 %s9, 2
    $region52: #{normalized_model_forward.1} parent=5 // pred_fallthru
      _
  $region6: #{normalized_model_forward.1} parent=0 // loop_footer
    %s13 = sadd.s32 1, %s9
  $region7: #{normalized_model_forward.1} parent=0 // loop_footer_branch
    %8 = sbr.rel target = $region3
  $region8: #{normalized_model_forward.1} parent=0 // loop_exit
    _

</llo_original>
